<compile_context>
chip_gen: v7x
topology: tpu7x:2x2x1
jax: 0.10.0
libtpu: 0.0.40
codegen_flags: <defaults>
</compile_context>

<pallas_src>
import jax
import jax.numpy as jnp
from jax import lax
from jax.experimental import pallas as pl
from jax.experimental.pallas import tpu as pltpu


def _pixelnorm_kernel(x_ref, o_ref):
    # x_ref / o_ref: (tile_n, C) blocks in VMEM; each row is normalized
    # independently by the RMS over its C channels.
    x = x_ref[...].astype(jnp.float32)
    mean_sq = jnp.mean(x * x, axis=-1, keepdims=True)   # cross-lane reduce (XLU)
    scale = lax.rsqrt(mean_sq + 1e-8)                   # EUP rsqrt
    o_ref[...] = (x * scale).astype(o_ref.dtype)


def _choose_tile_n(N, C, itemsize):
    """Largest sublane-aligned row-tile under a ~4 MiB per-block budget."""
    # Sublane packing: 8 rows for 4-byte, 16 for 2-byte, 32 for 1-byte dtypes.
    packing = 8 * max(1, 4 // itemsize)
    # ~4 MiB per block => in+out, double-buffered, ~16 MiB VMEM: safe on every
    # generation once the scoped limit is raised to 32 MiB (see CompilerParams).
    target_bytes = 4 * 1024 * 1024
    rows = max(packing, target_bytes // max(1, C * itemsize))
    rows = (rows // packing) * packing
    return rows, packing


def pixel_norm(x, *, tile_n=None):
    """PixelNorm over dim=1 for a 2-D input [N, C] (StyleCLIP mapper latents)."""
    N, C = x.shape
    itemsize = jnp.dtype(x.dtype).itemsize
    auto_rows, packing = _choose_tile_n(N, C, itemsize)

    if tile_n is None:
        tile_n = auto_rows
    else:
        # Respect caller's choice but keep it sublane-aligned.
        tile_n = max(packing, (int(tile_n) // packing) * packing)

    if tile_n >= N:
        # Single block covering the whole array (full-dim exemption covers any N).
        tile_n = N
        grid = (1,)
    else:
        grid = (pl.cdiv(N, tile_n),)   # ragged last block is clipped on writeback

    return pl.pallas_call(
        _pixelnorm_kernel,
        out_shape=jax.ShapeDtypeStruct((N, C), x.dtype),
        grid_spec=pl.GridSpec(
            grid=grid,
            in_specs=[pl.BlockSpec((tile_n, C), lambda i: (i, 0))],
            out_specs=pl.BlockSpec((tile_n, C), lambda i: (i, 0)),
        ),
        compiler_params=pltpu.CompilerParams(
            dimension_semantics=("parallel",),     # shard batch across v7x's 2 TCs
            vmem_limit_bytes=32 * 1024 * 1024,     # raise v5e's 16 MiB scoped default
        ),
    )(x)


def pixel_norm_ref(x):
    x32 = x.astype(jnp.float32)
    return (x32 * lax.rsqrt(jnp.mean(x32 * x32, axis=1, keepdims=True) + 1e-8)).astype(x.dtype)


if __name__ == "__main__":
    # StyleCLIP mapper-like latents: [batch, 512]
    x = jax.random.normal(jax.random.PRNGKey(0), (8, 512), dtype=jnp.float32)
    out = jax.block_until_ready(pixel_norm(x))
    ref = pixel_norm_ref(x)
    assert out.shape == ref.shape and out.dtype == ref.dtype
    assert jnp.allclose(out, ref, atol=1e-5, rtol=1e-5)

    # Ragged N with a forced small tile: exercises the pl.cdiv / partial-last-block path.
    x2 = jax.random.normal(jax.random.PRNGKey(1), (1000, 512), dtype=jnp.float32)
    out2 = jax.block_until_ready(pixel_norm(x2, tile_n=256))
    assert jnp.allclose(out2, pixel_norm_ref(x2), atol=1e-5, rtol=1e-5)

    # bf16: sublane packing = 16 rows per vreg; tile gets rounded accordingly.
    xb = jax.random.normal(jax.random.PRNGKey(2), (64, 512), dtype=jnp.bfloat16)
    outb = jax.block_until_ready(pixel_norm(xb, tile_n=32))
    refb = pixel_norm_ref(xb)
    assert jnp.allclose(outb.astype(jnp.float32), refb.astype(jnp.float32),
                        atol=2e-2, rtol=2e-2)

    print("KERNEL_OK")
</pallas_src>

<mosaic_0001>
module attributes {stable_mosaic.version = 11 : i64} {
  func.func @_pixelnorm_kernel(%arg0: i32, %arg1: memref<8x512xf32, #tpu.memory_space<vmem>>, %arg2: memref<8x512xf32, #tpu.memory_space<vmem>>) attributes {dimension_semantics = [#tpu.dimension_semantics<parallel>], iteration_bounds = array<i64: 1>, scalar_prefetch = 0 : i64, scratch_operands = 0 : i64, tpu.core_type = #tpu.core_type<tc>, window_params = [{transform_indices = @transform_0, window_bounds = array<i64: 8, 512>}, {transform_indices = @transform_1, window_bounds = array<i64: 8, 512>}]} {
    %c0 = arith.constant 0 : index
    %c0_0 = arith.constant 0 : index
    %0 = vector.load %arg1[%c0, %c0_0] : memref<8x512xf32, #tpu.memory_space<vmem>>, vector<8x512xf32>
    %1 = arith.mulf %0, %0 : vector<8x512xf32>
    %cst = arith.constant dense<0.000000e+00> : vector<8xf32>
    %2 = vector.multi_reduction <add>, %1, %cst [1] : vector<8x512xf32> to vector<8xf32>
    %3 = vector.shape_cast %2 : vector<8xf32> to vector<8x1xf32>
    %cst_1 = arith.constant 5.120000e+02 : f32
    %4 = vector.broadcast %cst_1 : f32 to vector<8x1xf32>
    %5 = arith.divf %3, %4 : vector<8x1xf32>
    %cst_2 = arith.constant 9.99999993E-9 : f32
    %6 = vector.broadcast %cst_2 : f32 to vector<8x1xf32>
    %7 = arith.addf %5, %6 : vector<8x1xf32>
    %8 = math.rsqrt %7 : vector<8x1xf32>
    %9 = vector.broadcast %8 : vector<8x1xf32> to vector<8x512xf32>
    %10 = arith.mulf %0, %9 : vector<8x512xf32>
    %c0_3 = arith.constant 0 : index
    %c0_4 = arith.constant 0 : index
    %11 = vector.load %arg2[%c0_3, %c0_4] : memref<8x512xf32, #tpu.memory_space<vmem>>, vector<8x512xf32>
    tpu.vector_store %arg2[%c0_3, %c0_4], %10 {strides = array<i32>} : memref<8x512xf32, #tpu.memory_space<vmem>>, vector<8x512xf32>,
    return
  }
  func.func @transform_0(%arg0: i32) -> (i32, i32) {
    %c0_i32 = arith.constant 0 : i32
    %c0_i32_0 = arith.constant 0 : i32
    return %arg0, %c0_i32 : i32, i32
  }
  func.func @transform_1(%arg0: i32) -> (i32, i32) {
    %c0_i32 = arith.constant 0 : i32
    %c0_i32_0 = arith.constant 0 : i32
    return %arg0, %c0_i32 : i32, i32
  }
}

</mosaic_0001>

<llo_original>
// kernel: tpu_custom_call.1
$region0: #{tpu_custom_call.1}
  #allocation0 [shape = 'u32[]', space=smem, size = 0x4, offset = 0x4, fixed_abs, tag = 'smem constant byte address 0x4 - core index']
  #allocation1 [shape = 'u32[144,128]{1,0:T(1,128)}', space=vmem, size = 0x12000, scoped, tag = 'internal scratch']
  %s0 = inlined_call_operand.hbm [shape: f32[8,512], index: 0, kind: input, shape index: {}]
  %s1 = inlined_call_operand.hbm [shape: f32[8,512], index: 1, kind: output, shape index: {}]
  %s2 = sld [smem:[#allocation0]]
  $region18: #{tpu_custom_call.1} parent=0
    _
  %s4 = ssub.s32 1, %s2
  %s5 = scalar_select 0, %s4, %s2
  $region1: #{tpu_custom_call.1} parent=0
    #allocation2 [shape = 'u8[16384]{0}', space=vmem, size = 0x4000, scoped, tag = 'input window, operand 0, single buffered']
    #allocation3 [shape = 's32[1]{0}', space=sflag, size = 0x4, scoped, tag = 'scoped memory for tpu_custom_call.1']
    #allocation4 [shape = 's32[1]{0}', space=sflag, size = 0x4, scoped, tag = 'scoped memory for tpu_custom_call.1']
    #allocation5 [shape = 'u8[16384]{0}', space=vmem, size = 0x4000, scoped, tag = 'output window, operand 0, single buffered']
    %6 = vsyncpa [#allocation3], 0
    %7 = vsyncpa [#allocation4], 0
    // Predicated region
    $region2: #{tpu_custom_call.1} parent=1 // pred_check
      _
    $region3: #{tpu_custom_call.1} parent=1 // pred_check_branch
      %9 = sbr.rel (0) target = $region5
    $region4: #{tpu_custom_call.1} parent=1 // pred_region
      %s11 = ssub.s32 512, 512
      %12 = vsyncadd [#allocation3], %s11
      %s14 = sshll.u32 [#allocation2], 4
      %s15 = int_to_ptr.vmem [resolvable:$true] %s14
      %17 = dma.hbm_to_vmem [thread:$0]  %s0, 512, %s15, [#allocation3]
    $region5: #{tpu_custom_call.1} parent=1 // pred_fallthru
      _
    // Predicated region
    $region6: #{tpu_custom_call.1} parent=1 // pred_check
      _
    $region7: #{tpu_custom_call.1} parent=1 // pred_check_branch
      %19 = sbr.rel (0) target = $region9
    $region8: #{tpu_custom_call.1} parent=1 // pred_region
      %20 = dma.done [#allocation3], 512
    $region9: #{tpu_custom_call.1} parent=1 // pred_fallthru
      _
    %v21 = vld [vmem:[#allocation2] sm:$0xff]
    %v22 = vld [vmem:[#allocation2 + $0x8] sm:$0xff]
    %v23 = vld [vmem:[#allocation2 + $0x10] sm:$0xff]
    %v24 = vld [vmem:[#allocation2 + $0x18] sm:$0xff]
    %v25 = vmul.f32 %v21, %v21
    %v26 = vmul.f32 %v22, %v22
    %v27 = vmul.f32 %v23, %v23
    %v28 = vmul.f32 %v24, %v24
    %v29 = vadd.f32 %v25, %v26
    %v30 = vadd.f32 %v29, %v27
    %v31 = vadd.f32 %v30, %v28
    %32 = vadd.xlane.f32.xlu0 %v31
    %v33 = vpop.xlane.xlu0 %32
    %v34 = vrcp.pop 512.0
    %v35 = vmul.f32 %v33, %v34
    %v36 = vadd.f32 %v35, 1e-08
    %v37 = vrsqrt.pop %v36
    %v38 = vmul.f32 %v21, %v37
    %v39 = vmul.f32 %v22, %v37
    %v40 = vmul.f32 %v23, %v37
    %v41 = vmul.f32 %v24, %v37
    %42 = vst [vmem:[#allocation5] sm:$0xff] %v38
    %43 = vst [vmem:[#allocation5 + $0x8] sm:$0xff] %v39
    %44 = vst [vmem:[#allocation5 + $0x10] sm:$0xff] %v40
    %45 = vst [vmem:[#allocation5 + $0x18] sm:$0xff] %v41
    // Predicated region
    $region10: #{tpu_custom_call.1} parent=1 // pred_check
      _
    $region11: #{tpu_custom_call.1} parent=1 // pred_check_branch
      %47 = sbr.rel (0) target = $region13
    $region12: #{tpu_custom_call.1} parent=1 // pred_region
      %s49 = ssub.s32 512, 512
      %50 = vsyncadd [#allocation4], %s49
      %s52 = sshll.u32 [#allocation5], 4
      %s53 = int_to_ptr.vmem [resolvable:$true] %s52
      %55 = dma.vmem_to_hbm [thread:$0]  %s53, 512, %s1, [#allocation4]
    $region13: #{tpu_custom_call.1} parent=1 // pred_fallthru
      _
    // Predicated region
    $region14: #{tpu_custom_call.1} parent=1 // pred_check
      _
    $region15: #{tpu_custom_call.1} parent=1 // pred_check_branch
      %57 = sbr.rel (0) target = $region17
    $region16: #{tpu_custom_call.1} parent=1 // pred_region
      %58 = dma.done [#allocation4], 512
    $region17: #{tpu_custom_call.1} parent=1 // pred_fallthru
      _
    %59 = vsyncpa [#allocation3], 1
    %60 = vsyncpa [#allocation4], 1

</llo_original>
